<compile_context>
chip_gen: v6e
topology: v6e:2x2x1
jax: 0.10.0
libtpu: 0.0.40
codegen_flags: <defaults>
</compile_context>

<pallas_src>
import numpy as np
import jax
import jax.numpy as jnp
from jax.experimental import pallas as pl
from jax.experimental.pallas import tpu as pltpu

# ~8 MiB per block: 2 arrays x 2 pipeline buffers x 8 MiB = 32 MiB of VMEM.
_TARGET_BLOCK_BYTES = 8 * 1024 * 1024
# Explicit scoped-VMEM limit (fits v7x's 64 MiB physical VMEM with headroom,
# and lifts v5e's 16 MiB default which the footprint would otherwise hit).
_VMEM_LIMIT_BYTES = 48 * 1024 * 1024


def _copy_kernel(x_ref, o_ref):
    # Bit-exact pass-through of one lane-dense block.
    o_ref[...] = x_ref[...]


def _choose_tiling(n_elems, itemsize):
    """Return (lane, rows, block_rows) for a lane-dense tiling, or None.

    Prefers exact tilings (block_rows divides rows, multiple of 8) so every
    grid step is a full unmasked store with identical DMA size.
    """
    lanes = [L for L in (1024, 512, 256, 128) if n_elems % L == 0]
    if not lanes:
        return None
    for lane in lanes:
        rows = n_elems // lane
        max_rows = max(8, (_TARGET_BLOCK_BYTES // (lane * itemsize)) // 8 * 8)
        if rows <= max_rows:
            # Whole array fits in one block.  Split into 2 equal (still
            # 8-aligned) blocks when possible so both v7x TensorCores get work.
            if rows >= 16 and rows % 16 == 0:
                return lane, rows, rows // 2
            return lane, rows, rows
        # Largest multiple-of-8 divisor of rows that fits the target bytes.
        for d in range(max_rows, 7, -8):
            if rows % d == 0:
                return lane, rows, d
    # No exact tiling found: accept a ragged final block (correct, minor perf).
    lane = lanes[0]
    rows = n_elems // lane
    max_rows = max(8, (_TARGET_BLOCK_BYTES // (lane * itemsize)) // 8 * 8)
    return lane, rows, min(max_rows, rows)


def _copy_2d(x2d, rows, lane, block_rows):
    n_bytes = rows * lane * np.dtype(x2d.dtype).itemsize
    cost = pl.CostEstimate(flops=0, transcendentals=0,
                           bytes_accessed=2 * n_bytes)
    return pl.pallas_call(
        _copy_kernel,
        out_shape=jax.ShapeDtypeStruct((rows, lane), x2d.dtype),
        grid=(pl.cdiv(rows, block_rows),),
        in_specs=[pl.BlockSpec((block_rows, lane), lambda i: (i, 0))],
        out_specs=pl.BlockSpec((block_rows, lane), lambda i: (i, 0)),
        compiler_params=pltpu.CompilerParams(
            dimension_semantics=("parallel",),
            vmem_limit_bytes=_VMEM_LIMIT_BYTES),
        cost_estimate=cost,
    )(x2d)


def _identity_copy(x):
    """Materialized identity: returns an independent copy of x via Pallas."""
    orig_shape = x.shape
    n = int(np.prod(orig_shape)) if orig_shape else 1
    itemsize = np.dtype(x.dtype).itemsize

    tiling = _choose_tiling(n, itemsize)
    if tiling is not None:
        lane, rows, block_rows = tiling
        out2d = _copy_2d(x.reshape(rows, lane), rows, lane, block_rows)
        return out2d.reshape(orig_shape)

    # Element count not divisible by 128: Pallas-copy the largest 128-multiple
    # prefix via the lane-dense path; handle the (<128 element) tail with
    # plain JAX.  This avoids the whole-array single-block fallback that could
    # exceed VMEM for large inputs.
    flat = x.reshape(-1)
    prefix = (n // 128) * 128
    if prefix == 0:
        return jnp.copy(x)  # tiny array, no useful Pallas tiling
    lane, rows, block_rows = _choose_tiling(prefix, itemsize)
    head = _copy_2d(flat[:prefix].reshape(rows, lane), rows, lane, block_rows)
    return jnp.concatenate([head.reshape(-1), flat[prefix:]]).reshape(orig_shape)


_identity_copy_jit = jax.jit(_identity_copy)


class DiscreteModleIdentity:
    """JAX/Pallas port of the PyTorch DiscreteModleIdentity module."""

    def __init__(self) -> None:
        # nn.Identity() has no parameters; nothing to initialize.
        pass

    def forward(self, image_embeds, input_ids=None, text_attention_mask=None,
                text_embeds=None):
        # The PyTorch forward() performs no compute and returns None.
        return None

    def __call__(self, *args, **kwargs):
        return self.forward(*args, **kwargs)

    def encode_image_embeds(self, image_embeds, materialize_copy: bool = False):
        # Default / production path: true identity, zero HBM traffic.  This
        # exactly matches nn.Identity (returns the same buffer, no copy).
        if not materialize_copy:
            return image_embeds
        # Optional Pallas path: lane-dense tiled copy producing a genuinely
        # independent output buffer (no aliasing, no donation).
        return _identity_copy_jit(image_embeds)


if __name__ == "__main__":
    key = jax.random.PRNGKey(0)
    # Small shapes consistent with the module: batch=2, seq=8, hidden=32.
    image_embeds = jax.random.normal(key, (2, 8, 32), dtype=jnp.float32)

    model = DiscreteModleIdentity()

    # forward() returns None, exactly like the PyTorch module.
    assert model(image_embeds) is None

    # Default path: pure pass-through (same buffer), zero HBM traffic.
    passthrough = model.encode_image_embeds(image_embeds)
    assert passthrough is image_embeds

    # Pallas path: materialized, independent copy.
    out = model.encode_image_embeds(image_embeds, materialize_copy=True)
    out = jax.block_until_ready(out)

    ref = np.asarray(image_embeds)
    assert out.shape == ref.shape
    assert out.dtype == ref.dtype
    assert np.array_equal(np.asarray(out), ref)

    print("KERNEL_OK")
</pallas_src>

<mosaic_0001>
module attributes {stable_mosaic.version = 11 : i64} {
  func.func @_copy_kernel(%arg0: i32, %arg1: memref<1x512xf32, #tpu.memory_space<vmem>>, %arg2: memref<1x512xf32, #tpu.memory_space<vmem>>) attributes {dimension_semantics = [#tpu.dimension_semantics<parallel>], iteration_bounds = array<i64: 1>, scalar_prefetch = 0 : i64, scratch_operands = 0 : i64, tpu.core_type = #tpu.core_type<tc>, window_params = [{transform_indices = @transform_0, window_bounds = array<i64: 1, 512>}, {transform_indices = @transform_1, window_bounds = array<i64: 1, 512>}]} {
    %c0 = arith.constant 0 : index
    %c0_0 = arith.constant 0 : index
    %0 = vector.load %arg1[%c0, %c0_0] : memref<1x512xf32, #tpu.memory_space<vmem>>, vector<1x512xf32>
    %c0_1 = arith.constant 0 : index
    %c0_2 = arith.constant 0 : index
    %1 = vector.load %arg2[%c0_1, %c0_2] : memref<1x512xf32, #tpu.memory_space<vmem>>, vector<1x512xf32>
    tpu.vector_store %arg2[%c0_1, %c0_2], %0 {strides = array<i32>} : memref<1x512xf32, #tpu.memory_space<vmem>>, vector<1x512xf32>,
    return
  }
  func.func @transform_0(%arg0: i32) -> (i32, i32) {
    %c0_i32 = arith.constant 0 : i32
    %c0_i32_0 = arith.constant 0 : i32
    return %arg0, %c0_i32 : i32, i32
  }
  func.func @transform_1(%arg0: i32) -> (i32, i32) {
    %c0_i32 = arith.constant 0 : i32
    %c0_i32_0 = arith.constant 0 : i32
    return %arg0, %c0_i32 : i32, i32
  }
}

</mosaic_0001>

<llo_original>
// kernel: _identity_copy.1
$region0: #{_identity_copy.1}
  #allocation0 [shape = 'u32[]', space=smem, size = 0x4, offset = 0x4, fixed_abs, tag = 'smem constant byte address 0x4 - core index']
  #allocation1 [shape = 'u32[144,128]{1,0:T(1,128)}', space=vmem, size = 0x12000, scoped, tag = 'internal scratch']
  %s0 = inlined_call_operand.vmem [shape: f32[1,512], index: 0, kind: input, shape index: {}]
  %s1 = inlined_call_operand.vmem [shape: f32[1,512], index: 1, kind: output, shape index: {}]
  %s2 = sld [smem:[#allocation0]]
  $region14: #{_identity_copy.1} parent=0
    _
  %s4 = ssub.s32 1, %s2
  %s5 = scalar_select 0, %s4, %s2
  // Predicated region
  $region2: #{_identity_copy.1} parent=0 // pred_check
    _
  $region3: #{_identity_copy.1} parent=0 // pred_check_branch
    %7 = sbr.rel (0) target = $region5
  $region4: #{_identity_copy.1} parent=0 // pred_region
    _
  $region5: #{_identity_copy.1} parent=0 // pred_fallthru
    _
  %v8 = vld [vmem:[%s0] sm:$0xf]
  %v9 = vlaneseq
  %vm10 = vcmp.ge.s32.totalorder %v9, 0
  %vm11 = vcmp.lt.s32.totalorder %v9, 512
  %vm12 = vmand %vm10, %vm11
  %13 = vst.msk [vmem:[%s1] sm:$0xf] %vm12, %v8
  // Predicated region
  $region6: #{_identity_copy.1} parent=0 // pred_check
    _
  $region7: #{_identity_copy.1} parent=0 // pred_check_branch
    %15 = sbr.rel (0) target = $region9
  $region8: #{_identity_copy.1} parent=0 // pred_region
    _
  $region9: #{_identity_copy.1} parent=0 // pred_fallthru
    _
  // Predicated region
  $region10: #{_identity_copy.1} parent=0 // pred_check
    _
  $region11: #{_identity_copy.1} parent=0 // pred_check_branch
    %17 = sbr.rel (0) target = $region13
  $region12: #{_identity_copy.1} parent=0 // pred_region
    _
  $region13: #{_identity_copy.1} parent=0 // pred_fallthru
    _

</llo_original>
